<compile_context>
chip_gen: v6e
topology: v6e:2x2x1
jax: 0.10.0
libtpu: 0.0.40
codegen_flags: <defaults>
</compile_context>

<pallas_src>
import functools

import jax
import jax.numpy as jnp
from jax import lax
from jax.experimental import pallas as pl
from jax.experimental.pallas import tpu as pltpu


def _composed_clamp_bounds(clamps):
    """Fold clamp(.,r) -> clamp(.,g) -> clamp(.,b) into one exact (lo, hi)."""
    min_r, max_r, min_g, max_g, min_b, max_b = clamps

    def f(v):
        # torch.clamp(v, min=a, max=b) == min(max(v, a), b)
        v = min(max(v, min_r), max_r)
        v = min(max(v, min_g), max_g)
        v = min(max(v, min_b), max_b)
        return v

    return f(float("-inf")), f(float("inf"))


# ---------------------------------------------------------------------------
# Fused kernel: per-image block, writes the zero-padding border directly.
# ---------------------------------------------------------------------------
def _fused_kernel(x_ref, w_ref, b_ref, o_ref, *, lo, hi, n_chan, H, W):
    # x_ref: (1, C, H, W) VMEM | w_ref: (C,) SMEM | b_ref: (1,) SMEM
    # o_ref: (1, H+2, W+2) VMEM
    acc = x_ref[0, 0] * w_ref[0]
    for c in range(1, n_chan):
        acc = acc + x_ref[0, c] * w_ref[c]
    acc = acc + b_ref[0]
    acc = jnp.minimum(jnp.maximum(acc, lo), hi)

    # 1x1 conv over the zero padding == bias -> clamp(bias) on the whole ring.
    border = jnp.minimum(jnp.maximum(b_ref[0], lo), hi)
    o_ref[...] = jnp.full(o_ref.shape, border, dtype=o_ref.dtype)
    # Overwrite the interior (cheap VMEM stores; block written back to HBM once).
    o_ref[0, pl.ds(1, H), pl.ds(1, W)] = acc.astype(o_ref.dtype)


def _fused_call(x, w_vec, b_vec, lo, hi):
    N, C, H, W = x.shape
    kernel = functools.partial(_fused_kernel, lo=lo, hi=hi, n_chan=C, H=H, W=W)
    out = pl.pallas_call(
        kernel,
        out_shape=jax.ShapeDtypeStruct((N, H + 2, W + 2), x.dtype),
        grid=(N,),
        in_specs=[
            pl.BlockSpec((1, C, H, W), lambda n: (n, 0, 0, 0)),
            pl.BlockSpec(memory_space=pltpu.MemorySpace.SMEM),   # weights
            pl.BlockSpec(memory_space=pltpu.MemorySpace.SMEM),   # bias
        ],
        out_specs=pl.BlockSpec((1, H + 2, W + 2), lambda n: (n, 0, 0)),
        compiler_params=pltpu.CompilerParams(dimension_semantics=("parallel",)),
    )(x, w_vec, b_vec)
    return out.reshape(N, 1, H + 2, W + 2)   # contiguous, free


# ---------------------------------------------------------------------------
# Tiled fallback kernel: interior only (border added with lax.pad afterwards).
# ---------------------------------------------------------------------------
def _interior_kernel(x_ref, w_ref, b_ref, o_ref, *, lo, hi, n_chan):
    acc = x_ref[0, 0] * w_ref[0]
    for c in range(1, n_chan):
        acc = acc + x_ref[0, c] * w_ref[c]
    acc = acc + b_ref[0]
    acc = jnp.minimum(jnp.maximum(acc, lo), hi)
    o_ref[...] = acc.reshape(o_ref.shape).astype(o_ref.dtype)   # leading-1 reshape: free


def _tiled_call(x, w_vec, b_vec, lo, hi, *, tile_rows, tile_pixels):
    N, C, H, W = x.shape
    P = H * W
    kernel = functools.partial(_interior_kernel, lo=lo, hi=hi, n_chan=C)
    params = pltpu.CompilerParams(dimension_semantics=("parallel", "parallel"))

    if P % 128 == 0:
        # Lane/sublane dense (R, 128) pixel view; all stores unmasked.
        R = P // 128
        tile_r = max(8, (tile_rows // 8) * 8)          # (8, 128) guard
        tile_r = R if R <= tile_r else tile_r          # full dim is always legal
        x_v = x.reshape(N, C, R, 128)                  # contiguous split: free
        interior = pl.pallas_call(
            kernel,
            out_shape=jax.ShapeDtypeStruct((N, R, 128), x.dtype),
            grid=(N, pl.cdiv(R, tile_r)),
            in_specs=[
                pl.BlockSpec((1, C, tile_r, 128), lambda n, r: (n, 0, r, 0)),
                pl.BlockSpec(memory_space=pltpu.MemorySpace.SMEM),
                pl.BlockSpec(memory_space=pltpu.MemorySpace.SMEM),
            ],
            out_specs=pl.BlockSpec((1, tile_r, 128), lambda n, r: (n, r, 0)),
            compiler_params=params,
        )(x_v, w_vec, b_vec)
    else:
        # Flat (N, C, P) view; 128-aligned pixel tiles -> only the ragged last
        # tile is masked, never lane-sparse W-wide stores.
        tp = max(128, (tile_pixels // 128) * 128)      # lane guard
        tp = P if P <= tp else tp
        x_v = x.reshape(N, C, P)                       # contiguous merge: free
        interior = pl.pallas_call(
            kernel,
            out_shape=jax.ShapeDtypeStruct((N, 1, P), x.dtype),
            grid=(N, pl.cdiv(P, tp)),
            in_specs=[
                pl.BlockSpec((1, C, tp), lambda n, p: (n, 0, p)),
                pl.BlockSpec(memory_space=pltpu.MemorySpace.SMEM),
                pl.BlockSpec(memory_space=pltpu.MemorySpace.SMEM),
            ],
            out_specs=pl.BlockSpec((1, 1, tp), lambda n, p: (n, 0, p)),
            compiler_params=params,
        )(x_v, w_vec, b_vec)

    interior = interior.reshape(N, 1, H, W)
    border = jnp.minimum(jnp.maximum(b_vec[0], lo), hi).astype(x.dtype)
    return lax.pad(interior, border,
                   [(0, 0, 0), (0, 0, 0), (1, 1, 0), (1, 1, 0)])


# ---------------------------------------------------------------------------
# Public wrapper.
# ---------------------------------------------------------------------------
def conv1x1_pad1_clamp(x, w, b, clamps, *, force_tiled=False,
                       tile_rows=1024, tile_pixels=1024 * 128,
                       fused_vmem_budget_bytes=8 * 1024 * 1024):
    """x: (N, C, H, W) f32; w: (1, C, 1, 1); b: (1,). Returns (N, 1, H+2, W+2)."""
    N, C, H, W = x.shape
    lo, hi = _composed_clamp_bounds(clamps)
    w_vec = w.reshape(C).astype(jnp.float32)   # (C,) -> SMEM
    b_vec = b.reshape(1).astype(jnp.float32)   # (1,) -> SMEM

    itemsize = jnp.dtype(x.dtype).itemsize
    # in-block + out-block, double-buffered; keep well under v5e's 16 MiB default.
    fused_block_bytes = (C * H * W + (H + 2) * (W + 2)) * itemsize
    use_fused = (not force_tiled) and (2 * fused_block_bytes <= fused_vmem_budget_bytes)

    if use_fused:
        return _fused_call(x, w_vec, b_vec, lo, hi)
    return _tiled_call(x, w_vec, b_vec, lo, hi,
                       tile_rows=tile_rows, tile_pixels=tile_pixels)


def _reference(x, w, b, clamps):
    min_r, max_r, min_g, max_g, min_b, max_b = clamps
    y = lax.conv_general_dilated(
        x, w, window_strides=(1, 1), padding=((1, 1), (1, 1)),
        dimension_numbers=("NCHW", "OIHW", "NCHW"),
    ) + b.reshape(1, -1, 1, 1)
    y = jnp.minimum(jnp.maximum(y, min_r), max_r)
    y = jnp.minimum(jnp.maximum(y, min_g), max_g)
    y = jnp.minimum(jnp.maximum(y, min_b), max_b)
    return y


if __name__ == "__main__":
    key = jax.random.PRNGKey(0)
    kx, kw, kb = jax.random.split(key, 3)
    C = 3

    # Deterministic synthetic Conv2d(3, 1, 1) parameters.
    w = jax.random.normal(kw, (1, C, 1, 1), dtype=jnp.float32) * 0.5
    b = jax.random.normal(kb, (1,), dtype=jnp.float32) * 0.1
    # Constructor clamp bounds (min_r, max_r, min_g, max_g, min_b, max_b).
    clamps = (-0.5, 0.5, -0.3, 0.4, -0.2, 0.3)

    # (shape, force_tiled, tile_pixels): exercises the fused path, the (R,128)
    # tiled subpath (P % 128 == 0) and the flat tiled subpath incl. a ragged tile.
    checks = [
        ((2, C, 16, 16), False, 1024 * 128),   # fused (default path)
        ((1, C, 64, 64), False, 1024 * 128),   # fused, the module's own shape
        ((2, C, 16, 16), True, 1024 * 128),    # tiled, (R, 128) subpath
        ((2, C, 20, 30), True, 512),           # tiled, flat subpath + ragged tile
    ]
    for i, (shape, force_tiled, tile_pixels) in enumerate(checks):
        x = jax.random.normal(jax.random.fold_in(kx, i), shape, dtype=jnp.float32)
        out = conv1x1_pad1_clamp(x, w, b, clamps, force_tiled=force_tiled,
                                 tile_pixels=tile_pixels)
        out = jax.block_until_ready(out)
        ref = _reference(x, w, b, clamps)
        n, _, h, ww = shape
        assert out.shape == (n, 1, h + 2, ww + 2), (out.shape, shape)
        assert jnp.allclose(out, ref, atol=1e-5, rtol=1e-5), f"mismatch on case {i}"

    print("KERNEL_OK")
</pallas_src>

<mosaic_0001>
module attributes {stable_mosaic.version = 11 : i64} {
  func.func @_fused_kernel(%arg0: i32, %arg1: memref<1x3x16x16xf32, #tpu.memory_space<vmem>>, %arg2: memref<3xf32, #tpu.memory_space<smem>>, %arg3: memref<1xf32, #tpu.memory_space<smem>>, %arg4: memref<1x18x18xf32, #tpu.memory_space<vmem>>) attributes {dimension_semantics = [#tpu.dimension_semantics<parallel>], iteration_bounds = array<i64: 2>, scalar_prefetch = 0 : i64, scratch_operands = 0 : i64, tpu.core_type = #tpu.core_type<tc>, window_params = [{transform_indices = @transform_0, window_bounds = array<i64: 1, 3, 16, 16>}, {transform_indices = @transform_1, window_bounds = array<i64: 3>}, {transform_indices = @transform_2, window_bounds = array<i64: 1>}, {transform_indices = @transform_3, window_bounds = array<i64: 1, 18, 18>}]} {
    %c0 = arith.constant 0 : index
    %c0_0 = arith.constant 0 : index
    %c0_1 = arith.constant 0 : index
    %c0_2 = arith.constant 0 : index
    %0 = vector.load %arg1[%c0, %c0_0, %c0_1, %c0_2] : memref<1x3x16x16xf32, #tpu.memory_space<vmem>>, vector<1x1x16x16xf32>
    %1 = vector.shape_cast %0 : vector<1x1x16x16xf32> to vector<16x16xf32>
    %c0_3 = arith.constant 0 : index
    %2 = memref.load %arg2[%c0_3] : memref<3xf32, #tpu.memory_space<smem>>
    %3 = vector.broadcast %2 : f32 to vector<16x16xf32>
    %4 = arith.mulf %1, %3 : vector<16x16xf32>
    %c0_4 = arith.constant 0 : index
    %c1 = arith.constant 1 : index
    %c0_5 = arith.constant 0 : index
    %c0_6 = arith.constant 0 : index
    %5 = vector.load %arg1[%c0_4, %c1, %c0_5, %c0_6] : memref<1x3x16x16xf32, #tpu.memory_space<vmem>>, vector<1x1x16x16xf32>
    %6 = vector.shape_cast %5 : vector<1x1x16x16xf32> to vector<16x16xf32>
    %c1_7 = arith.constant 1 : index
    %7 = memref.load %arg2[%c1_7] : memref<3xf32, #tpu.memory_space<smem>>
    %8 = vector.broadcast %7 : f32 to vector<16x16xf32>
    %9 = arith.mulf %6, %8 : vector<16x16xf32>
    %10 = arith.addf %4, %9 : vector<16x16xf32>
    %c0_8 = arith.constant 0 : index
    %c2 = arith.constant 2 : index
    %c0_9 = arith.constant 0 : index
    %c0_10 = arith.constant 0 : index
    %11 = vector.load %arg1[%c0_8, %c2, %c0_9, %c0_10] : memref<1x3x16x16xf32, #tpu.memory_space<vmem>>, vector<1x1x16x16xf32>
    %12 = vector.shape_cast %11 : vector<1x1x16x16xf32> to vector<16x16xf32>
    %c2_11 = arith.constant 2 : index
    %13 = memref.load %arg2[%c2_11] : memref<3xf32, #tpu.memory_space<smem>>
    %14 = vector.broadcast %13 : f32 to vector<16x16xf32>
    %15 = arith.mulf %12, %14 : vector<16x16xf32>
    %16 = arith.addf %10, %15 : vector<16x16xf32>
    %c0_12 = arith.constant 0 : index
    %17 = memref.load %arg3[%c0_12] : memref<1xf32, #tpu.memory_space<smem>>
    %18 = vector.broadcast %17 : f32 to vector<16x16xf32>
    %19 = arith.addf %16, %18 : vector<16x16xf32>
    %cst = arith.constant -2.000000e-01 : f32
    %20 = vector.broadcast %cst : f32 to vector<16x16xf32>
    %21 = arith.maximumf %19, %20 : vector<16x16xf32>
    %cst_13 = arith.constant 3.000000e-01 : f32
    %22 = vector.broadcast %cst_13 : f32 to vector<16x16xf32>
    %23 = arith.minimumf %21, %22 : vector<16x16xf32>
    %c0_14 = arith.constant 0 : index
    %24 = memref.load %arg3[%c0_14] : memref<1xf32, #tpu.memory_space<smem>>
    %cst_15 = arith.constant -2.000000e-01 : f32
    %25 = arith.maximumf %24, %cst_15 : f32
    %cst_16 = arith.constant 3.000000e-01 : f32
    %26 = arith.minimumf %25, %cst_16 : f32
    %27 = vector.broadcast %26 : f32 to vector<1x18x18xf32>
    %c0_17 = arith.constant 0 : index
    %c0_18 = arith.constant 0 : index
    %c0_19 = arith.constant 0 : index
    %28 = vector.load %arg4[%c0_17, %c0_18, %c0_19] : memref<1x18x18xf32, #tpu.memory_space<vmem>>, vector<1x18x18xf32>
    tpu.vector_store %arg4[%c0_17, %c0_18, %c0_19], %27 {strides = array<i32>} : memref<1x18x18xf32, #tpu.memory_space<vmem>>, vector<1x18x18xf32>,
    %c0_20 = arith.constant 0 : index
    %c1_21 = arith.constant 1 : index
    %c1_22 = arith.constant 1 : index
    %29 = vector.load %arg4[%c0_20, %c1_21, %c1_22] : memref<1x18x18xf32, #tpu.memory_space<vmem>>, vector<1x16x16xf32>
    %30 = vector.shape_cast %29 : vector<1x16x16xf32> to vector<16x16xf32>
    %31 = vector.shape_cast %23 : vector<16x16xf32> to vector<1x16x16xf32>
    tpu.vector_store %arg4[%c0_20, %c1_21, %c1_22], %31 {strides = array<i32>} : memref<1x18x18xf32, #tpu.memory_space<vmem>>, vector<1x16x16xf32>,
    return
  }
  func.func @transform_0(%arg0: i32) -> (i32, i32, i32, i32) {
    %c0_i32 = arith.constant 0 : i32
    %c0_i32_0 = arith.constant 0 : i32
    %c0_i32_1 = arith.constant 0 : i32
    %c0_i32_2 = arith.constant 0 : i32
    return %arg0, %c0_i32, %c0_i32_0, %c0_i32_1 : i32, i32, i32, i32
  }
  func.func @transform_1(%arg0: i32) -> i32 {
    %c0_i32 = arith.constant 0 : i32
    %c0_i32_0 = arith.constant 0 : i32
    return %c0_i32 : i32
  }
  func.func @transform_2(%arg0: i32) -> i32 {
    %c0_i32 = arith.constant 0 : i32
    %c0_i32_0 = arith.constant 0 : i32
    return %c0_i32 : i32
  }
  func.func @transform_3(%arg0: i32) -> (i32, i32, i32) {
    %c0_i32 = arith.constant 0 : i32
    %c0_i32_0 = arith.constant 0 : i32
    %c0_i32_1 = arith.constant 0 : i32
    return %arg0, %c0_i32, %c0_i32_0 : i32, i32, i32
  }
}

</mosaic_0001>

<llo_original>
// kernel: tpu_custom_call.1
$region0: #{tpu_custom_call.1}
  #allocation0 [shape = 'u32[]', space=smem, size = 0x4, offset = 0x4, fixed_abs, tag = 'smem constant byte address 0x4 - core index']
  #allocation1 [shape = 'u32[144,128]{1,0:T(1,128)}', space=vmem, size = 0x12000, scoped, tag = 'internal scratch']
  #allocation2 [shape = 'f32[1]{0:T(128)S(6)}', space=smem, size = 0x200, scoped, tag = 'scoped memory for tpu_custom_call.1']
  %s0 = inlined_call_operand.hbm [shape: f32[2,3,16,16], index: 0, kind: input, shape index: {}]
  %s1 = inlined_call_operand.vmem [shape: f32[3], index: 1, kind: input, shape index: {}]
  %s2 = inlined_call_operand.<no memory space> [shape: f32[1], index: 2, kind: input, shape index: {}]
  %s3 = inlined_call_operand.vmem [shape: f32[2,18,18], index: 3, kind: output, shape index: {}]
  %s4 = sld [smem:[#allocation0]]
  $region53: #{tpu_custom_call.1} parent=0
    _
  %s6 = ssub.s32 1, %s4
  %s7 = scalar_select 0, %s6, %s4
  %8 = sst [smem:[#allocation2]] %s2
  $region1: #{tpu_custom_call.1} parent=0
    #allocation3 [shape = 'u8[49152]{0}', space=vmem, size = 0xc000, scoped, tag = 'input window, operand 0']
    #allocation4 [shape = 's32[2]{0}', space=sflag, size = 0x8, scoped, tag = 'scoped memory for tpu_custom_call.1']
    #allocation5 [shape = 's32[2]{0}', space=sflag, size = 0x8, scoped, tag = 'scoped memory for tpu_custom_call.1']
    #allocation6 [shape = 'u8[512]{0}', space=smem, size = 0x200, scoped, tag = 'input window, operand 1, single buffered']
    %9 = vsyncpa [#allocation4], 0
    %s10 = scalar_lea.sflag [#allocation4], 1
    %11 = vsyncpa %s10, 0
    %12 = vsyncpa [#allocation5], 0
    loop: start=0, step=1, limit=4
    $region2: #{tpu_custom_call.1} parent=1 // loop_pre_header
      _
    $region3: #{tpu_custom_call.1} parent=1 // loop_header
      %s14 = sphi 0, %s18
      %p15 = scmp.ge.s32.totalorder %s14, 4
      %s24 = sphi 0, %s26
      %s27 = sphi 0, %s24
      %s28 = sphi 0, %s27
      %s44 = sphi 0, %s28
      %s48 = sphi 0, %s48
      %s50 = sphi 0, %s48
      %s51 = sphi 0, %s50
      %s65 = sphi 0, %s51
      %s69 = sphi 0, %s69
      %s71 = sphi 0, %s69
      %s72 = sphi 0, %s71
      %s86 = sphi 0, %s72
      %s92 = sphi 0, %s94
      %s95 = sphi 0, %s92
      %s96 = sphi 0, %s95
      %s112 = sphi 0, %s96
    $region4: #{tpu_custom_call.1} parent=1 // loop_header_branch
      %17 = sbr.rel (%p15) target = $region8
    $region5: #{tpu_custom_call.1} parent=1 // loop_body
      %s19 = ssub.s32 %s14, 1
      %s20 = ssub.s32 %s14, 2
      %s21 = sadd.s32 %s14, 1
      %s22 = ssub.s32 %s14, %s21
      %p23 = scmp.eq.s32.totalorder %s22, 0
      %s25 = sadd.s32 %s24, 1
      %s26 = scalar_select %p23, %s24, %s25
      %p29 = pneg %p23
      %p30 = scmp.eq.s32.totalorder %s14, 1
      %p31 = por %p29, %p30
      %p32 = scmp.ne.s32.totalorder %s24, %s27
      %p33 = scmp.eq.s32.totalorder %s14, 0
      %p34 = por %p32, %p33
      %p35 = scmp.ne.s32.totalorder %s24, %s27
      %p36 = scmp.eq.s32.totalorder %s19, 1
      %p37 = por %p35, %p36
      %p38 = scmp.ne.s32.totalorder %s27, %s28
      %p39 = scmp.eq.s32.totalorder %s19, 0
      %p40 = por %p38, %p39
      %p41 = scmp.ne.s32.totalorder %s27, %s28
      %p42 = scmp.eq.s32.totalorder %s20, 1
      %p43 = por %p41, %p42
      %p45 = scmp.ne.s32.totalorder %s28, %s44
      %p46 = scmp.eq.s32.totalorder %s20, 0
      %p47 = por %p45, %p46
      %s49 = sadd.s32 %s48, 1
      %p52 = scmp.eq.s32.totalorder %s14, 1
      %p53 = scmp.ne.s32.totalorder %s48, %s50
      %p54 = scmp.eq.s32.totalorder %s14, 0
      %p55 = por %p53, %p54
      %p56 = scmp.ne.s32.totalorder %s48, %s50
      %p57 = scmp.eq.s32.totalorder %s19, 1
      %p58 = por %p56, %p57
      %p59 = scmp.ne.s32.totalorder %s50, %s51
      %p60 = scmp.eq.s32.totalorder %s19, 0
      %p61 = por %p59, %p60
      %p62 = scmp.ne.s32.totalorder %s50, %s51
      %p63 = scmp.eq.s32.totalorder %s20, 1
      %p64 = por %p62, %p63
      %p66 = scmp.ne.s32.totalorder %s51, %s65
      %p67 = scmp.eq.s32.totalorder %s20, 0
      %p68 = por %p66, %p67
      %s70 = sadd.s32 %s69, 1
      %p73 = scmp.eq.s32.totalorder %s14, 1
      %p74 = scmp.ne.s32.totalorder %s69, %s71
      %p75 = scmp.eq.s32.totalorder %s14, 0
      %p76 = por %p74, %p75
      %p77 = scmp.ne.s32.totalorder %s69, %s71
      %p78 = scmp.eq.s32.totalorder %s19, 1
      %p79 = por %p77, %p78
      %p80 = scmp.ne.s32.totalorder %s71, %s72
      %p81 = scmp.eq.s32.totalorder %s19, 0
      %p82 = por %p80, %p81
      %p83 = scmp.ne.s32.totalorder %s71, %s72
      %p84 = scmp.eq.s32.totalorder %s20, 1
      %p85 = por %p83, %p84
      %p87 = scmp.ne.s32.totalorder %s72, %s86
      %p88 = scmp.eq.s32.totalorder %s20, 0
      %p89 = por %p87, %p88
      %s90 = ssub.s32 %s14, %s21
      %p91 = scmp.eq.s32.totalorder %s90, 0
      %s93 = sadd.s32 %s92, 1
      %s94 = scalar_select %p91, %s92, %s93
      %p97 = pneg %p91
      %p98 = scmp.eq.s32.totalorder %s14, 1
      %p99 = por %p97, %p98
      %p100 = scmp.ne.s32.totalorder %s92, %s95
      %p101 = scmp.eq.s32.totalorder %s14, 0
      %p102 = por %p100, %p101
      %p103 = scmp.ne.s32.totalorder %s92, %s95
      %p104 = scmp.eq.s32.totalorder %s19, 1
      %p105 = por %p103, %p104
      %p106 = scmp.ne.s32.totalorder %s95, %s96
      %p107 = scmp.eq.s32.totalorder %s19, 0
      %p108 = por %p106, %p107
      %p109 = scmp.ne.s32.totalorder %s95, %s96
      %p110 = scmp.eq.s32.totalorder %s20, 1
      %p111 = por %p109, %p110
      %p113 = scmp.ne.s32.totalorder %s96, %s112
      %p114 = scmp.eq.s32.totalorder %s20, 0
      %p115 = por %p113, %p114
      %p116 = scmp.le.s32.totalorder 1, %s14
      %p117 = scmp.lt.s32.totalorder %s14, 3
      %p118 = pnand %p116, %p117
      %p119 = pneg %p118
      // Predicated region
      $region9: #{tpu_custom_call.1} parent=5 // pred_check
        _
      $region10: #{tpu_custom_call.1} parent=5 // pred_check_branch
        %121 = sbr.rel (%p118) target = $region12
      $region11: #{tpu_custom_call.1} parent=5 // pred_region
        %s122 = ssub.s32 %s14, 1
        // Predicated region
        $region13: #{tpu_custom_call.1} parent=11 // pred_check
          %p123 = pneg %p61
        $region14: #{tpu_custom_call.1} parent=11 // pred_check_branch
          %125 = sbr.rel (%p123) target = $region16
        $region15: #{tpu_custom_call.1} parent=11 // pred_region
          %s127 = ssub.s32 16, 16
          %128 = vsyncadd [#allocation5], %s127
          %s130 = sshll.u32 %s1, 4
          %s131 = int_to_ptr.vmem [resolvable:$true] %s130
          %133 = dma.vmem_to_smem %s131, 16, [#allocation6], [#allocation5]
        $region16: #{tpu_custom_call.1} parent=11 // pred_fallthru
          _
        // Predicated region
        $region17: #{tpu_custom_call.1} parent=11 // pred_check
          %p134 = pneg %p82
        $region18: #{tpu_custom_call.1} parent=11 // pred_check_branch
          %136 = sbr.rel (%p134) target = $region20
        $region19: #{tpu_custom_call.1} parent=11 // pred_region
          _
        $region20: #{tpu_custom_call.1} parent=11 // pred_fallthru
          _
      $region12: #{tpu_custom_call.1} parent=5 // pred_fallthru
        _
      %p137 = scmp.lt.s32.totalorder %s14, 2
      // Predicated region
      $region21: #{tpu_custom_call.1} parent=5 // pred_check
        %p138 = pneg %p137
      $region22: #{tpu_custom_call.1} parent=5 // pred_check_branch
        %140 = sbr.rel (%p138) target = $region24
      $region23: #{tpu_custom_call.1} parent=5 // pred_region
        // Predicated region
        $region25: #{tpu_custom_call.1} parent=23 // pred_check
          %p141 = pneg %p34
        $region26: #{tpu_custom_call.1} parent=23 // pred_check_branch
          %143 = sbr.rel (%p141) target = $region28
        $region27: #{tpu_custom_call.1} parent=23 // pred_region
          %s144 = sand.u32 %s24, 1
          %s145 = scalar_lea.sflag [#allocation4], %s144
          %s146 = sand.u32 %s24, 1
          %s147 = smul.addr %s146, 48
          %s148 = scalar_lea.vmem [#allocation3], %s147
          %s150 = ssub.s32 768, 768
          %151 = vsyncadd %s145, %s150
          %s152 = smul.addr %s14, 6
          %s153 = smul.addr %s152, 128
          %s154 = scalar_lea.hbm %s0, %s153
          %s155 = sshll.u32 %s148, 4
          %s156 = int_to_ptr.vmem [resolvable:$true] %s155
          %161 = dma.hbm_to_vmem [thread:$0]  %s154, 768, %s156, %s145, 128, 128, 8
        $region28: #{tpu_custom_call.1} parent=23 // pred_fallthru
          _
      $region24: #{tpu_custom_call.1} parent=5 // pred_fallthru
        _
      %p162 = scmp.le.s32.totalorder 1, %s14
      %p163 = scmp.lt.s32.totalorder %s14, 3
      %p164 = pnand %p162, %p163
      %p165 = pneg %p164
      // Predicated region
      $region29: #{tpu_custom_call.1} parent=5 // pred_check
        _
      $region30: #{tpu_custom_call.1} parent=5 // pred_check_branch
        %167 = sbr.rel (%p164) target = $region32
      $region31: #{tpu_custom_call.1} parent=5 // pred_region
        %s168 = ssub.s32 %s14, 1
        %s169 = sand.u32 %s27, 1
        %s170 = scalar_lea.sflag [#allocation4], %s169
        %s171 = sand.u32 %s27, 1
        %s172 = smul.addr %s171, 48
        %s173 = scalar_lea.vmem [#allocation3], %s172
        // Predicated region
        $region33: #{tpu_custom_call.1} parent=31 // pred_check
          %p174 = pneg %p40
        $region34: #{tpu_custom_call.1} parent=31 // pred_check_branch
          %176 = sbr.rel (%p174) target = $region36
        $region35: #{tpu_custom_call.1} parent=31 // pred_region
          %177 = dma.done %s170, 768
        $region36: #{tpu_custom_call.1} parent=31 // pred_fallthru
          _
        // Predicated region
        $region37: #{tpu_custom_call.1} parent=31 // pred_check
          %p178 = pneg %p61
        $region38: #{tpu_custom_call.1} parent=31 // pred_check_branch
          %180 = sbr.rel (%p178) target = $region40
        $region39: #{tpu_custom_call.1} parent=31 // pred_region
          %181 = dma.done [#allocation5], 16
        $region40: #{tpu_custom_call.1} parent=31 // pred_fallthru
          _
        %182 = sfence
        %s183 = sand.u32 %s27, 1
        %s184 = scalar_lea.sflag [#allocation4], %s183
        %s185 = sand.u32 %s27, 1
        %s186 = smul.addr %s185, 48
        %s187 = scalar_lea.vmem [#allocation3], %s186
        %p188 = pneg %p40
        %p189 = pneg %p37
        %p190 = pneg %p61
        %p191 = pneg %p58
        %p192 = pneg %p82
        %p193 = pneg %p79
        %p194 = pneg %p108
        %p195 = pneg %p105
        %p196 = scmp.lt.s32.totalorder %s19, 1
        %s197 = scalar_select %p196, %s19, 1
        %s198 = smul.addr %s197, 3
        %s199 = smul.addr %s198, 8
        %s200 = scalar_lea.vmem %s3, %s199
        %p201 = scmp.lt.s32.totalorder %s19, 1
        %s202 = scalar_select %p201, %s19, 1
        %s203 = smul.addr %s202, 3
        %s204 = smul.addr %s203, 8
        %s205 = scalar_lea.vmem %s3, %s204
        %v206 = vld [vmem:[%s173] sm:$0xff]
        %v207 = vld [vmem:[%s173 + $0x8] sm:$0xff]
        %s208 = sld [smem:[#allocation6]]
        %v209 = vstv %s208
        %v210 = vmul.f32 %v206, %v209
        %v211 = vmul.f32 %v207, %v209
        %s212 = scalar_lea.vmem %s173, 16 [#allocation3]
        %v213 = vld [vmem:[%s212] sm:$0xff]
        %v214 = vld [vmem:[%s212 + $0x8] sm:$0xff]
        %s215 = sld [smem:[#allocation6 + $0x1]]
        %v216 = vstv %s215
        %v217 = vmul.f32 %v213, %v216
        %v218 = vmul.f32 %v214, %v216
        %v219 = vadd.f32 %v210, %v217
        %v220 = vadd.f32 %v211, %v218
        %s221 = scalar_lea.vmem %s173, 32 [#allocation3]
        %v222 = vld [vmem:[%s221] sm:$0xff]
        %v223 = vld [vmem:[%s221 + $0x8] sm:$0xff]
        %s224 = sld [smem:[#allocation6 + $0x2]]
        %v225 = vstv %s224
        %v226 = vmul.f32 %v222, %v225
        %v227 = vmul.f32 %v223, %v225
        %v228 = vadd.f32 %v219, %v226
        %v229 = vadd.f32 %v220, %v227
        %s230 = sld [smem:[#allocation2]]
        %v231 = vstv %s230
        %v232 = vadd.f32 %v228, %v231
        %v233 = vadd.f32 %v229, %v231
        %v234 = vmax.f32 %v232, -0.2
        %v235 = vmax.f32 %v233, -0.2
        %v236 = vmin.f32 %v234, 0.3
        %v237 = vmin.f32 %v235, 0.3
        %s238 = smax.f32 %s230, -0.2
        %s239 = smin.f32 %s238, 0.3
        %v240 = vstv %s239
        %vm241 = vcmask 146432
        %242 = vst.msk [vmem:[%s205] sm:$0xff] %vm241, %v240
        %243 = vst.msk [vmem:[%s205 + $0x8] sm:$0xff] %vm241, %v240
        %vm244 = vcmask 140288
        %245 = vst.msk [vmem:[%s205 + $0x10] sm:$0x3] %vm244, %v240
        %248 = vrot.lane.b32.xlu0 %v236, 1
        %v249 = vpop.permute.xlu0 %248
        %250 = vrot.lane.b32.xlu0 %v237, 1
        %v251 = vpop.permute.xlu0 %250
        %vm254 = vcmask 138248
        %255 = vst.msk [vmem:[%s205 + $0x1] sm:$0xff] %vm254, %v249
        %256 = vst.msk [vmem:[%s205 + $0x9] sm:$0xff] %vm254, %v251
        %p257 = scmp.lt.s32.totalorder %s19, 1
        %s258 = scalar_select %p257, %s19, 1
        %s259 = smul.addr %s258, 3
        %s260 = smul.addr %s259, 8
        %s261 = scalar_lea.vmem %s3, %s260
        // Predicated region
        $region41: #{tpu_custom_call.1} parent=31 // pred_check
          %p262 = pneg %p105
        $region42: #{tpu_custom_call.1} parent=31 // pred_check_branch
          %264 = sbr.rel (%p262) target = $region44
        $region43: #{tpu_custom_call.1} parent=31 // pred_region
          _
        $region44: #{tpu_custom_call.1} parent=31 // pred_fallthru
          _
      $region32: #{tpu_custom_call.1} parent=5 // pred_fallthru
        _
      %p265 = scmp.le.s32.totalorder 2, %s14
      // Predicated region
      $region45: #{tpu_custom_call.1} parent=5 // pred_check
        %p266 = pneg %p265
      $region46: #{tpu_custom_call.1} parent=5 // pred_check_branch
        %268 = sbr.rel (%p266) target = $region48
      $region47: #{tpu_custom_call.1} parent=5 // pred_region
        %s269 = ssub.s32 %s14, 2
        // Predicated region
        $region49: #{tpu_custom_call.1} parent=47 // pred_check
          %p270 = pneg %p111
        $region50: #{tpu_custom_call.1} parent=47 // pred_check_branch
          %272 = sbr.rel (%p270) target = $region52
        $region51: #{tpu_custom_call.1} parent=47 // pred_region
          %p273 = scmp.lt.s32.totalorder %s20, 1
          %s274 = scalar_select %p273, %s20, 1
          %s275 = smul.addr %s274, 3
          %s276 = smul.addr %s275, 8
          %s277 = scalar_lea.vmem %s3, %s276
        $region52: #{tpu_custom_call.1} parent=47 // pred_fallthru
          _
      $region48: #{tpu_custom_call.1} parent=5 // pred_fallthru
        _
    $region6: #{tpu_custom_call.1} parent=1 // loop_footer
      %s18 = sadd.s32 1, %s14
    $region7: #{tpu_custom_call.1} parent=1 // loop_footer_branch
      %13 = sbr.rel target = $region3
    $region8: #{tpu_custom_call.1} parent=1 // loop_exit
      _
    %278 = vsyncpa [#allocation4], 1
    %s279 = scalar_lea.sflag [#allocation4], 1
    %280 = vsyncpa %s279, 1
    %281 = vsyncpa [#allocation5], 1
    %s282 = scalar_lea.sflag [#allocation5], 1
    %283 = vsyncpa %s282, 1

</llo_original>
